<compile_context>
chip_gen: v7x
topology: tpu7x:2x2x1
jax: 0.10.0
libtpu: 0.0.40
codegen_flags: <defaults>
</compile_context>

<pallas_src>
import math

import jax
import jax.numpy as jnp
from jax.experimental import pallas as pl
from jax.experimental.pallas import tpu as pltpu


_BLOCK_BYTE_CAP = 6 * 1024 * 1024       # per output block (double-buffered)
_VMEM_LIMIT_BYTES = 32 * 1024 * 1024    # >= every default scoped limit, <= physical everywhere
_PRETILE_TARGET_ROWS = 256              # ~128 KiB (f32) parameter repeat unit


def _slab_kernel(p_ref, o_ref):
    """p_ref: (unit, 128) repeat pattern; o_ref: (reps*unit, 128) output block."""
    unit = p_ref.shape[0]
    reps = o_ref.shape[0] // unit        # static; tiling guarantees exact division
    pat = p_ref[...]
    if reps == 1:
        o_ref[...] = pat
    else:
        for r in range(reps):            # static Python loop, small (<= ~48)
            o_ref[pl.ds(r * unit, unit), :] = pat


def _row_kernel(p_ref, o_ref):
    """p_ref: (1, tn) parameter tile; o_ref: (tile_b, tn) output block."""
    o_ref[...] = jnp.broadcast_to(p_ref[...], o_ref.shape)


def leaf_param(p, x):
    """LeafParam.forward: ignore x's values, return p broadcast to (B, n)."""
    B = int(x.shape[0])
    n = int(p.shape[1])
    dtype = p.dtype
    itemsize = jnp.dtype(dtype).itemsize
    sub = max(8, 32 // itemsize)         # sublane quantum: 8 (f32), 16 (bf16), 32 (i8)
    total = B * n

    cost = pl.CostEstimate(flops=0, transcendentals=0,
                           bytes_accessed=(total + n) * itemsize)

    # ------------------------- lane-dense slab path -------------------------
    g = math.gcd(n, 128)
    rows_per_period = n // g                                   # 128-lane rows per repeat of p
    base = rows_per_period * (sub // math.gcd(rows_per_period, sub))   # lcm(rp, sub)
    lane_dense = (total % 128 == 0) and (base * 128 * itemsize <= _BLOCK_BYTE_CAP)

    if lane_dense:
        R = total // 128                                       # rows of the (R, 128) slab
        # Repeat "unit": multiple of the period and the sublane quantum,
        # scaled to ~_PRETILE_TARGET_ROWS rows, never exceeding R.
        k0 = min(max(1, _PRETILE_TARGET_ROWS // base), max(1, R // base))
        unit = min(base * k0, R)

        # Output block = k units, capped at ~_BLOCK_BYTE_CAP and split into
        # >= 2 grid steps whenever possible (v7x megacore utilization).
        units_total = pl.cdiv(R, unit)
        max_units = max(1, _BLOCK_BYTE_CAP // (unit * 128 * itemsize))
        k = min(max_units, units_total)
        if units_total >= 2:
            k = max(1, min(k, pl.cdiv(units_total, 2)))
        tile_r = min(k * unit, R)
        grid = (pl.cdiv(R, tile_r),)

        # Pre-tile p into exactly one repeat unit (row-major identical to the
        # output slab pattern).  Tiny (<= ~128 KiB), done once by XLA.
        p_unit = jnp.tile(p.reshape(-1), (unit * 128) // n).reshape(unit, 128)

        out_slab = pl.pallas_call(
            _slab_kernel,
            out_shape=jax.ShapeDtypeStruct((R, 128), dtype),
            grid_spec=pltpu.PrefetchScalarGridSpec(
                num_scalar_prefetch=0,
                grid=grid,
                in_specs=[pl.BlockSpec((unit, 128), lambda i: (0, 0))],
                out_specs=pl.BlockSpec((tile_r, 128), lambda i: (i, 0)),
            ),
            compiler_params=pltpu.CompilerParams(
                dimension_semantics=("parallel",),
                vmem_limit_bytes=_VMEM_LIMIT_BYTES,
            ),
            cost_estimate=cost,
        )(p_unit)
        # Same contiguous row-major layout -> free reshape back to (B, n).
        return out_slab.reshape(B, n)

    # --------------- fallback: (tile_b, tn) blocks over (B, n) ---------------
    # Lane tiling only when a single sub-row band of full n would blow the cap.
    if n > 128 and sub * n * itemsize > _BLOCK_BYTE_CAP:
        tn = max(128, (_BLOCK_BYTE_CAP // (sub * 128 * itemsize)) * 128)
        tn = min(tn, n)
    else:
        tn = n

    if B <= sub:
        tile_b = B                                            # block == full dim (legal)
    else:
        units_total = pl.cdiv(B, sub)
        max_units = max(1, _BLOCK_BYTE_CAP // (sub * tn * itemsize))
        k = min(max_units, units_total)
        if units_total >= 2:
            k = max(1, min(k, pl.cdiv(units_total, 2)))
        tile_b = min(k * sub, B)

    grid = (pl.cdiv(B, tile_b), pl.cdiv(n, tn))

    return pl.pallas_call(
        _row_kernel,
        out_shape=jax.ShapeDtypeStruct((B, n), dtype),
        grid_spec=pltpu.PrefetchScalarGridSpec(
            num_scalar_prefetch=0,
            grid=grid,
            in_specs=[pl.BlockSpec((1, tn), lambda i, j: (0, j))],
            out_specs=pl.BlockSpec((tile_b, tn), lambda i, j: (i, j)),
        ),
        compiler_params=pltpu.CompilerParams(
            dimension_semantics=("parallel", "parallel"),
            vmem_limit_bytes=_VMEM_LIMIT_BYTES,
        ),
        cost_estimate=cost,
    )(p)


def _reference(p, x):
    return jnp.broadcast_to(p, (x.shape[0], p.shape[1]))


if __name__ == "__main__":
    key = jax.random.PRNGKey(0)
    kp, kx, kp2, kx2 = jax.random.split(key, 4)

    # Primary small case (module semantics): B=8 batch, n=32 parameter width.
    B, Din, n = 8, 16, 32
    # The module initializes p to zeros; random values make the check non-trivial.
    p = jax.random.normal(kp, (1, n), dtype=jnp.float32)
    x = jax.random.normal(kx, (B, Din), dtype=jnp.float32)   # values ignored
    out = jax.block_until_ready(leaf_param(p, x))
    assert out.shape == (B, n), out.shape
    assert jnp.array_equal(out, _reference(p, x)), "lane-dense path mismatch"

    # Ragged case (B*n not a multiple of 128) exercising the fallback path.
    B2, n2 = 5, 7
    p2 = jax.random.normal(kp2, (1, n2), dtype=jnp.float32)
    x2 = jax.random.normal(kx2, (B2, 3), dtype=jnp.float32)
    out2 = jax.block_until_ready(leaf_param(p2, x2))
    assert out2.shape == (B2, n2), out2.shape
    assert jnp.array_equal(out2, _reference(p2, x2)), "fallback path mismatch"

    print("KERNEL_OK")
</pallas_src>

<mosaic_0001>
module attributes {stable_mosaic.version = 11 : i64} {
  func.func @_slab_kernel(%arg0: i32, %arg1: memref<2x128xf32, #tpu.memory_space<vmem>>, %arg2: memref<2x128xf32, #tpu.memory_space<vmem>>) attributes {dimension_semantics = [#tpu.dimension_semantics<parallel>], iteration_bounds = array<i64: 1>, scalar_prefetch = 0 : i64, scratch_operands = 0 : i64, tpu.core_type = #tpu.core_type<tc>, window_params = [{pipeline_mode = #tpu.pipeline_mode<synchronous>, transform_indices = @transform_0, window_bounds = array<i64: 2, 128>}, {transform_indices = @transform_1, window_bounds = array<i64: 2, 128>}]} {
    %c0 = arith.constant 0 : index
    %c0_0 = arith.constant 0 : index
    %0 = vector.load %arg1[%c0, %c0_0] : memref<2x128xf32, #tpu.memory_space<vmem>>, vector<2x128xf32>
    %c0_1 = arith.constant 0 : index
    %c0_2 = arith.constant 0 : index
    %1 = vector.load %arg2[%c0_1, %c0_2] : memref<2x128xf32, #tpu.memory_space<vmem>>, vector<2x128xf32>
    tpu.vector_store %arg2[%c0_1, %c0_2], %0 {strides = array<i32>} : memref<2x128xf32, #tpu.memory_space<vmem>>, vector<2x128xf32>,
    return
  }
  func.func @transform_0(%arg0: i32) -> (i32, i32) {
    %c0_i32 = arith.constant 0 : i32
    %c0_i32_0 = arith.constant 0 : i32
    %c0_i32_1 = arith.constant 0 : i32
    return %c0_i32, %c0_i32_0 : i32, i32
  }
  func.func @transform_1(%arg0: i32) -> (i32, i32) {
    %c0_i32 = arith.constant 0 : i32
    %c0_i32_0 = arith.constant 0 : i32
    return %arg0, %c0_i32 : i32, i32
  }
}

</mosaic_0001>

<llo_original>
// kernel: tpu_custom_call.1
$region0: #{tpu_custom_call.1}
  #allocation0 [shape = 'u32[]', space=smem, size = 0x4, offset = 0x4, fixed_abs, tag = 'smem constant byte address 0x4 - core index']
  #allocation1 [shape = 'u32[144,128]{1,0:T(1,128)}', space=vmem, size = 0x12000, scoped, tag = 'internal scratch']
  %s0 = inlined_call_operand.hbm [shape: f32[2,128], index: 0, kind: input, shape index: {}]
  %s1 = inlined_call_operand.hbm [shape: f32[2,128], index: 1, kind: output, shape index: {}]
  %s2 = sld [smem:[#allocation0]]
  $region18: #{tpu_custom_call.1} parent=0
    _
  %s4 = ssub.s32 1, %s2
  %s5 = scalar_select 0, %s4, %s2
  $region1: #{tpu_custom_call.1} parent=0
    #allocation2 [shape = 'u8[1024]{0}', space=vmem, size = 0x400, scoped, tag = 'input window, operand 0, single buffered']
    #allocation3 [shape = 's32[1]{0}', space=sflag, size = 0x4, scoped, tag = 'scoped memory for tpu_custom_call.1']
    #allocation4 [shape = 's32[1]{0}', space=sflag, size = 0x4, scoped, tag = 'scoped memory for tpu_custom_call.1']
    #allocation5 [shape = 'u8[1024]{0}', space=vmem, size = 0x400, scoped, tag = 'output window, operand 0, single buffered']
    %6 = vsyncpa [#allocation3], 0
    %7 = vsyncpa [#allocation4], 0
    // Predicated region
    $region2: #{tpu_custom_call.1} parent=1 // pred_check
      _
    $region3: #{tpu_custom_call.1} parent=1 // pred_check_branch
      %9 = sbr.rel (0) target = $region5
    $region4: #{tpu_custom_call.1} parent=1 // pred_region
      %s11 = ssub.s32 32, 32
      %12 = vsyncadd [#allocation3], %s11
      %s14 = sshll.u32 [#allocation2], 4
      %s15 = int_to_ptr.vmem [resolvable:$true] %s14
      %17 = dma.hbm_to_vmem [thread:$0]  %s0, 32, %s15, [#allocation3]
    $region5: #{tpu_custom_call.1} parent=1 // pred_fallthru
      _
    // Predicated region
    $region6: #{tpu_custom_call.1} parent=1 // pred_check
      _
    $region7: #{tpu_custom_call.1} parent=1 // pred_check_branch
      %19 = sbr.rel (0) target = $region9
    $region8: #{tpu_custom_call.1} parent=1 // pred_region
      %20 = dma.done [#allocation3], 32
    $region9: #{tpu_custom_call.1} parent=1 // pred_fallthru
      _
    %v21 = vld [vmem:[#allocation2] sm:$0x3]
    %22 = vst [vmem:[#allocation5] sm:$0x3] %v21
    // Predicated region
    $region10: #{tpu_custom_call.1} parent=1 // pred_check
      _
    $region11: #{tpu_custom_call.1} parent=1 // pred_check_branch
      %24 = sbr.rel (0) target = $region13
    $region12: #{tpu_custom_call.1} parent=1 // pred_region
      %s26 = ssub.s32 32, 32
      %27 = vsyncadd [#allocation4], %s26
      %s29 = sshll.u32 [#allocation5], 4
      %s30 = int_to_ptr.vmem [resolvable:$true] %s29
      %32 = dma.vmem_to_hbm [thread:$0]  %s30, 32, %s1, [#allocation4]
    $region13: #{tpu_custom_call.1} parent=1 // pred_fallthru
      _
    // Predicated region
    $region14: #{tpu_custom_call.1} parent=1 // pred_check
      _
    $region15: #{tpu_custom_call.1} parent=1 // pred_check_branch
      %34 = sbr.rel (0) target = $region17
    $region16: #{tpu_custom_call.1} parent=1 // pred_region
      %35 = dma.done [#allocation4], 32
    $region17: #{tpu_custom_call.1} parent=1 // pred_fallthru
      _
    %36 = vsyncpa [#allocation3], 1
    %37 = vsyncpa [#allocation4], 1

</llo_original>
